<compile_context>
chip_gen: v5e
topology: v5e:2x2
jax: 0.10.0
libtpu: 0.0.40
codegen_flags: <defaults>
</compile_context>

<pallas_src>
import functools

import jax
import jax.numpy as jnp
from jax.experimental import pallas as pl
from jax.experimental.pallas import tpu as pltpu


def _box_blur_kernel(x_ref, o_ref, *, kh, kw, ph, pw, out_h, out_w):
    """Blur `bc_tile` whole channel images (one grid step).

    x_ref: (bc_tile, h, w)          input block (VMEM, original dtype)
    o_ref: (bc_tile, out_h, out_w)  output block (VMEM, original dtype)
    """
    inv = 1.0 / float(kh * kw)

    x = x_ref[...]                         # stays in input dtype (bf16 stays bf16)
    bt, h, w = x.shape

    # --- virtual zero padding along W (lane axis): thin strips only --------
    if pw > 0:
        zcol = jnp.zeros((bt, h, pw), x.dtype)
        xw = jnp.concatenate([zcol, x, zcol], axis=2)        # (bt, h, w + 2*pw)
    else:
        xw = x

    # --- Pass 1 (separable): kw lane-shifted adds, f32 accumulation --------
    acc_w = xw[:, :, 0:out_w].astype(jnp.float32)
    for j in range(1, kw):
        acc_w = acc_w + xw[:, :, j:j + out_w].astype(jnp.float32)

    # --- virtual zero padding along H (sublane axis) -----------------------
    if ph > 0:
        zrow = jnp.zeros((bt, ph, out_w), jnp.float32)
        rows = jnp.concatenate([zrow, acc_w, zrow], axis=1)   # (bt, h+2ph, out_w)
    else:
        rows = acc_w

    # --- Pass 2 (separable): kh sublane-shifted adds ------------------------
    acc = rows[:, 0:out_h, :]
    for i in range(1, kh):
        acc = acc + rows[:, i:i + out_h, :]

    o_ref[...] = (acc * inv).astype(o_ref.dtype)


def _vmem_capacity_bytes():
    try:
        return int(pltpu.get_tpu_info().vmem_capacity_bytes)
    except Exception:
        return 128 << 20  # v5e/v6e default


def _per_channel_footprint_bytes(h, w, out_h, out_w, ph, pw, itemsize):
    """Full per-channel footprint: 2x double-buffered blocks + f32 working set."""
    wp, hp = w + 2 * pw, h + 2 * ph
    in_blk = h * w * itemsize
    out_blk = out_h * out_w * itemsize
    # Value working set the kernel may spill: padded input (input dtype),
    # W-pass accumulator, H-padded rows, H-pass accumulator (f32).
    work = h * wp * itemsize + (h * out_w + hp * out_w + out_h * out_w) * 4
    return 2 * (in_blk + out_blk) + work


def _pick_bc_tile(bc, per_channel_bytes, budget_bytes, min_steps):
    """Largest divisor of bc whose footprint fits the budget with >=min_steps steps."""
    best = 1
    for t in range(1, bc + 1):
        if bc % t != 0:
            continue
        if (bc // t) < min(min_steps, bc):
            continue  # >=2 steps per v7x TensorCore / pipeline depth elsewhere
        if t * per_channel_bytes > budget_bytes:
            continue
        best = t
    return best


def box_blur(x, kernel_size):
    """Equivalent of kornia BoxBlur(kernel_size)(x) for NCHW input x."""
    kh, kw = int(kernel_size[0]), int(kernel_size[1])
    ph, pw = (kh - 1) // 2, (kw - 1) // 2
    b, c, h, w = x.shape
    # conv2d output spatial size with stride=1, padding=(ph, pw)
    out_h = h + 2 * ph - kh + 1
    out_w = w + 2 * pw - kw + 1
    bc = b * c
    itemsize = x.dtype.itemsize

    vmem_cap = _vmem_capacity_bytes()
    # Generation-aware per-step budget: ~40 MiB of a 64 MiB part (v7x),
    # ~24 MiB of a 128 MiB part (v5e/v6e).
    budget = (40 << 20) if vmem_cap <= (64 << 20) else (24 << 20)

    per_ch = _per_channel_footprint_bytes(h, w, out_h, out_w, ph, pw, itemsize)
    bc_tile = _pick_bc_tile(bc, per_ch, budget, min_steps=4)
    grid = (bc // bc_tile,)

    # Tight scoped-VMEM limit: footprint + ~25% + 2 MiB, floored/capped sanely.
    need = bc_tile * per_ch
    vmem_limit = int(need + need // 4 + (2 << 20))
    vmem_limit = max(vmem_limit, 16 << 20)
    vmem_limit = min(vmem_limit, int(vmem_cap * 0.85))

    cost = pl.CostEstimate(
        flops=int((kh + kw) * bc * out_h * out_w),
        transcendentals=0,
        bytes_accessed=int(bc * (h * w + out_h * out_w) * itemsize),
    )

    kernel = functools.partial(
        _box_blur_kernel, kh=kh, kw=kw, ph=ph, pw=pw, out_h=out_h, out_w=out_w)

    out = pl.pallas_call(
        kernel,
        out_shape=jax.ShapeDtypeStruct((bc, out_h, out_w), x.dtype),
        grid_spec=pltpu.PrefetchScalarGridSpec(
            num_scalar_prefetch=0,
            grid=grid,
            # last two block dims equal the full array dims -> (8,128) rule ok
            in_specs=[pl.BlockSpec((bc_tile, h, w), lambda n: (n, 0, 0))],
            out_specs=pl.BlockSpec((bc_tile, out_h, out_w),
                                   lambda n: (n, 0, 0)),
        ),
        compiler_params=pltpu.CompilerParams(
            dimension_semantics=("parallel",),
            vmem_limit_bytes=vmem_limit,
        ),
        cost_estimate=cost,
    )(x.reshape(bc, h, w))
    return out.reshape(b, c, out_h, out_w)


def _reference_box_blur(x, kernel_size):
    """Pure-JAX reference mirroring torch.nn.functional.conv2d(groups=C)."""
    kh, kw = kernel_size
    ph, pw = (kh - 1) // 2, (kw - 1) // 2
    b, c, h, w = x.shape
    xp = jnp.pad(x, ((0, 0), (0, 0), (ph, ph), (pw, pw)))
    out_h = h + 2 * ph - kh + 1
    out_w = w + 2 * pw - kw + 1
    acc = jnp.zeros((b, c, out_h, out_w), jnp.float32)
    for i in range(kh):
        for j in range(kw):
            acc = acc + xp[:, :, i:i + out_h, j:j + out_w].astype(jnp.float32)
    return (acc / float(kh * kw)).astype(x.dtype)


if __name__ == "__main__":
    key = jax.random.PRNGKey(0)
    x = jax.random.normal(key, (2, 4, 16, 16), dtype=jnp.float32)

    # primary check: 3x3 box blur (same spatial size out)
    y = jax.block_until_ready(box_blur(x, (3, 3)))
    y_ref = _reference_box_blur(x, (3, 3))
    assert y.shape == (2, 4, 16, 16), y.shape
    assert jnp.allclose(y, y_ref, atol=1e-5, rtol=1e-5)

    # secondary check: rectangular kernel exercises both separable passes
    y2 = jax.block_until_ready(box_blur(x, (5, 3)))
    y2_ref = _reference_box_blur(x, (5, 3))
    assert jnp.allclose(y2, y2_ref, atol=1e-5, rtol=1e-5)

    print("KERNEL_OK")
</pallas_src>

<mosaic_0001>
module attributes {stable_mosaic.version = 11 : i64} {
  func.func @_box_blur_kernel(%arg0: i32, %arg1: memref<2x16x16xf32, #tpu.memory_space<vmem>>, %arg2: memref<2x16x16xf32, #tpu.memory_space<vmem>>) attributes {dimension_semantics = [#tpu.dimension_semantics<parallel>], iteration_bounds = array<i64: 4>, scalar_prefetch = 0 : i64, scratch_operands = 0 : i64, tpu.core_type = #tpu.core_type<tc>, window_params = [{transform_indices = @transform_0, window_bounds = array<i64: 2, 16, 16>}, {transform_indices = @transform_1, window_bounds = array<i64: 2, 16, 16>}]} {
    %c0 = arith.constant 0 : index
    %c0_0 = arith.constant 0 : index
    %c0_1 = arith.constant 0 : index
    %0 = vector.load %arg1[%c0, %c0_0, %c0_1] : memref<2x16x16xf32, #tpu.memory_space<vmem>>, vector<2x16x16xf32>
    %cst = arith.constant 0.000000e+00 : f32
    %1 = vector.broadcast %cst : f32 to vector<2x16x1xf32>
    %2 = tpu.concatenate %1, %0, %1 in 2 : vector<2x16x1xf32>, vector<2x16x16xf32>, vector<2x16x1xf32> -> vector<2x16x18xf32>
    %3 = vector.extract_strided_slice %2 {offsets = [0, 0, 0], sizes = [2, 16, 16], strides = [1, 1, 1]} : vector<2x16x18xf32> to vector<2x16x16xf32>
    %4 = vector.extract_strided_slice %2 {offsets = [0, 0, 1], sizes = [2, 16, 16], strides = [1, 1, 1]} : vector<2x16x18xf32> to vector<2x16x16xf32>
    %5 = arith.addf %3, %4 : vector<2x16x16xf32>
    %6 = vector.extract_strided_slice %2 {offsets = [0, 0, 2], sizes = [2, 16, 16], strides = [1, 1, 1]} : vector<2x16x18xf32> to vector<2x16x16xf32>
    %7 = arith.addf %5, %6 : vector<2x16x16xf32>
    %cst_2 = arith.constant 0.000000e+00 : f32
    %8 = vector.broadcast %cst_2 : f32 to vector<2x1x16xf32>
    %9 = tpu.concatenate %8, %7, %8 in 1 : vector<2x1x16xf32>, vector<2x16x16xf32>, vector<2x1x16xf32> -> vector<2x18x16xf32>
    %10 = vector.extract_strided_slice %9 {offsets = [0, 0, 0], sizes = [2, 16, 16], strides = [1, 1, 1]} : vector<2x18x16xf32> to vector<2x16x16xf32>
    %11 = vector.extract_strided_slice %9 {offsets = [0, 1, 0], sizes = [2, 16, 16], strides = [1, 1, 1]} : vector<2x18x16xf32> to vector<2x16x16xf32>
    %12 = arith.addf %10, %11 : vector<2x16x16xf32>
    %13 = vector.extract_strided_slice %9 {offsets = [0, 2, 0], sizes = [2, 16, 16], strides = [1, 1, 1]} : vector<2x18x16xf32> to vector<2x16x16xf32>
    %14 = arith.addf %12, %13 : vector<2x16x16xf32>
    %cst_3 = arith.constant 0.111111112 : f32
    %15 = vector.broadcast %cst_3 : f32 to vector<2x16x16xf32>
    %16 = arith.mulf %14, %15 : vector<2x16x16xf32>
    %c0_4 = arith.constant 0 : index
    %c0_5 = arith.constant 0 : index
    %c0_6 = arith.constant 0 : index
    %17 = vector.load %arg2[%c0_4, %c0_5, %c0_6] : memref<2x16x16xf32, #tpu.memory_space<vmem>>, vector<2x16x16xf32>
    tpu.vector_store %arg2[%c0_4, %c0_5, %c0_6], %16 {strides = array<i32>} : memref<2x16x16xf32, #tpu.memory_space<vmem>>, vector<2x16x16xf32>,
    return
  }
  func.func @transform_0(%arg0: i32) -> (i32, i32, i32) {
    %c0_i32 = arith.constant 0 : i32
    %c0_i32_0 = arith.constant 0 : i32
    %c0_i32_1 = arith.constant 0 : i32
    return %arg0, %c0_i32, %c0_i32_0 : i32, i32, i32
  }
  func.func @transform_1(%arg0: i32) -> (i32, i32, i32) {
    %c0_i32 = arith.constant 0 : i32
    %c0_i32_0 = arith.constant 0 : i32
    %c0_i32_1 = arith.constant 0 : i32
    return %arg0, %c0_i32, %c0_i32_0 : i32, i32, i32
  }
}

</mosaic_0001>

<llo_original>
// kernel: tpu_custom_call.1
$region0: #{tpu_custom_call.1}
  #allocation0 [shape = 'u32[]', space=smem, size = 0x4, offset = 0x4, fixed_abs, tag = 'smem constant byte address 0x4 - core index']
  #allocation1 [shape = 'u32[72,128]{1,0:T(1,128)}', space=vmem, size = 0x9000, scoped, tag = 'internal scratch']
  %s0 = inlined_call_operand.hbm [shape: f32[8,16,16], index: 0, kind: input, shape index: {}]
  %s1 = inlined_call_operand.hbm [shape: f32[8,16,16], index: 1, kind: output, shape index: {}]
  %s2 = sld [smem:[#allocation0]]
  $region41: #{tpu_custom_call.1} parent=0
    _
  %s4 = ssub.s32 1, %s2
  %s5 = scalar_select 0, %s4, %s2
  $region1: #{tpu_custom_call.1} parent=0
    #allocation2 [shape = 'u8[32768]{0}', space=vmem, size = 0x8000, scoped, tag = 'input window, operand 0']
    #allocation3 [shape = 's32[2]{0}', space=sflag, size = 0x8, scoped, tag = 'scoped memory for tpu_custom_call.1']
    #allocation4 [shape = 's32[2]{0}', space=sflag, size = 0x8, scoped, tag = 'scoped memory for tpu_custom_call.1']
    #allocation5 [shape = 'u8[32768]{0}', space=vmem, size = 0x8000, scoped, tag = 'output window, operand 0']
    %6 = vsyncpa [#allocation3], 0
    %s7 = scalar_lea.sflag [#allocation3], 1
    %8 = vsyncpa %s7, 0
    %9 = vsyncpa [#allocation4], 0
    %s10 = scalar_lea.sflag [#allocation4], 1
    %11 = vsyncpa %s10, 0
    loop: start=0, step=1, limit=6
    $region2: #{tpu_custom_call.1} parent=1 // loop_pre_header
      _
    $region3: #{tpu_custom_call.1} parent=1 // loop_header
      %s13 = sphi 0, %s17
      %p14 = scmp.ge.s32.totalorder %s13, 6
      %s23 = sphi 0, %s25
      %s26 = sphi 0, %s23
      %s27 = sphi 0, %s26
      %s43 = sphi 0, %s27
      %s49 = sphi 0, %s51
      %s52 = sphi 0, %s49
      %s53 = sphi 0, %s52
      %s69 = sphi 0, %s53
    $region4: #{tpu_custom_call.1} parent=1 // loop_header_branch
      %16 = sbr.rel (%p14) target = $region8
    $region5: #{tpu_custom_call.1} parent=1 // loop_body
      %s18 = ssub.s32 %s13, 1
      %s19 = ssub.s32 %s13, 2
      %s20 = sadd.s32 %s13, 1
      %s21 = ssub.s32 %s13, %s20
      %p22 = scmp.eq.s32.totalorder %s21, 0
      %s24 = sadd.s32 %s23, 1
      %s25 = scalar_select %p22, %s23, %s24
      %p28 = pneg %p22
      %p29 = scmp.eq.s32.totalorder %s13, 3
      %p30 = por %p28, %p29
      %p31 = scmp.ne.s32.totalorder %s23, %s26
      %p32 = scmp.eq.s32.totalorder %s13, 0
      %p33 = por %p31, %p32
      %p34 = scmp.ne.s32.totalorder %s23, %s26
      %p35 = scmp.eq.s32.totalorder %s18, 3
      %p36 = por %p34, %p35
      %p37 = scmp.ne.s32.totalorder %s26, %s27
      %p38 = scmp.eq.s32.totalorder %s18, 0
      %p39 = por %p37, %p38
      %p40 = scmp.ne.s32.totalorder %s26, %s27
      %p41 = scmp.eq.s32.totalorder %s19, 3
      %p42 = por %p40, %p41
      %p44 = scmp.ne.s32.totalorder %s27, %s43
      %p45 = scmp.eq.s32.totalorder %s19, 0
      %p46 = por %p44, %p45
      %s47 = ssub.s32 %s13, %s20
      %p48 = scmp.eq.s32.totalorder %s47, 0
      %s50 = sadd.s32 %s49, 1
      %s51 = scalar_select %p48, %s49, %s50
      %p54 = pneg %p48
      %p55 = scmp.eq.s32.totalorder %s13, 3
      %p56 = por %p54, %p55
      %p57 = scmp.ne.s32.totalorder %s49, %s52
      %p58 = scmp.eq.s32.totalorder %s13, 0
      %p59 = por %p57, %p58
      %p60 = scmp.ne.s32.totalorder %s49, %s52
      %p61 = scmp.eq.s32.totalorder %s18, 3
      %p62 = por %p60, %p61
      %p63 = scmp.ne.s32.totalorder %s52, %s53
      %p64 = scmp.eq.s32.totalorder %s18, 0
      %p65 = por %p63, %p64
      %p66 = scmp.ne.s32.totalorder %s52, %s53
      %p67 = scmp.eq.s32.totalorder %s19, 3
      %p68 = por %p66, %p67
      %p70 = scmp.ne.s32.totalorder %s53, %s69
      %p71 = scmp.eq.s32.totalorder %s19, 0
      %p72 = por %p70, %p71
      %p73 = scmp.le.s32.totalorder 1, %s13
      %p74 = scmp.lt.s32.totalorder %s13, 5
      %p75 = pnand %p73, %p74
      %p76 = pneg %p75
      // Predicated region
      $region9: #{tpu_custom_call.1} parent=5 // pred_check
        _
      $region10: #{tpu_custom_call.1} parent=5 // pred_check_branch
        %78 = sbr.rel (%p75) target = $region12
      $region11: #{tpu_custom_call.1} parent=5 // pred_region
        %s79 = ssub.s32 %s13, 1
      $region12: #{tpu_custom_call.1} parent=5 // pred_fallthru
        _
      %p80 = scmp.lt.s32.totalorder %s13, 4
      // Predicated region
      $region13: #{tpu_custom_call.1} parent=5 // pred_check
        %p81 = pneg %p80
      $region14: #{tpu_custom_call.1} parent=5 // pred_check_branch
        %83 = sbr.rel (%p81) target = $region16
      $region15: #{tpu_custom_call.1} parent=5 // pred_region
        // Predicated region
        $region17: #{tpu_custom_call.1} parent=15 // pred_check
          %p84 = pneg %p33
        $region18: #{tpu_custom_call.1} parent=15 // pred_check_branch
          %86 = sbr.rel (%p84) target = $region20
        $region19: #{tpu_custom_call.1} parent=15 // pred_region
          %s87 = sand.u32 %s23, 1
          %s88 = scalar_lea.sflag [#allocation3], %s87
          %s89 = sand.u32 %s23, 1
          %s90 = smul.addr %s89, 32
          %s91 = scalar_lea.vmem [#allocation2], %s90
          %s92 = smul.u32 2, %s13
          %94 = vsyncadd %s88, 0
          %s95 = smul.addr %s92, 2
          %s96 = smul.addr %s95, 8
          %s97 = scalar_lea.hbm %s0, %s96
          %s98 = sshll.u32 %s97, 4
          %s99 = int_to_ptr.hbm [resolvable:$true] %s98
          %s100 = sshll.u32 %s91, 4
          %s101 = int_to_ptr.vmem [resolvable:$true] %s100
          %106 = dma.hbm_to_vmem [thread:$0]  %s99, 512, %s101, %s88, 128, 128, 8
        $region20: #{tpu_custom_call.1} parent=15 // pred_fallthru
          _
      $region16: #{tpu_custom_call.1} parent=5 // pred_fallthru
        _
      %p107 = scmp.le.s32.totalorder 1, %s13
      %p108 = scmp.lt.s32.totalorder %s13, 5
      %p109 = pnand %p107, %p108
      %p110 = pneg %p109
      // Predicated region
      $region21: #{tpu_custom_call.1} parent=5 // pred_check
        _
      $region22: #{tpu_custom_call.1} parent=5 // pred_check_branch
        %112 = sbr.rel (%p109) target = $region24
      $region23: #{tpu_custom_call.1} parent=5 // pred_region
        %s113 = ssub.s32 %s13, 1
        %s114 = sand.u32 %s26, 1
        %s115 = scalar_lea.sflag [#allocation3], %s114
        %s116 = sand.u32 %s26, 1
        %s117 = smul.addr %s116, 32
        %s118 = scalar_lea.vmem [#allocation2], %s117
        // Predicated region
        $region25: #{tpu_custom_call.1} parent=23 // pred_check
          %p119 = pneg %p39
        $region26: #{tpu_custom_call.1} parent=23 // pred_check_branch
          %121 = sbr.rel (%p119) target = $region28
        $region27: #{tpu_custom_call.1} parent=23 // pred_region
          %123 = dma.done %s115, 512
        $region28: #{tpu_custom_call.1} parent=23 // pred_fallthru
          _
        %s124 = sand.u32 %s26, 1
        %s125 = scalar_lea.sflag [#allocation3], %s124
        %s126 = sand.u32 %s26, 1
        %s127 = smul.addr %s126, 32
        %s128 = scalar_lea.vmem [#allocation2], %s127
        %p129 = pneg %p39
        %p130 = pneg %p36
        %p131 = pneg %p65
        %p132 = pneg %p62
        %s133 = sand.u32 %s52, 1
        %s134 = scalar_lea.sflag [#allocation4], %s133
        %s135 = sand.u32 %s52, 1
        %s136 = smul.addr %s135, 32
        %s137 = scalar_lea.vmem [#allocation5], %s136
        %s138 = smul.u32 2, %s18
        %s139 = smul.u32 2, %s18
        %v140 = vld [vmem:[%s118] sm:$0xff]
        %v141 = vld [vmem:[%s118 + $0x8] sm:$0xff]
        %v142 = vld [vmem:[%s118 + $0x10] sm:$0xff]
        %v143 = vld [vmem:[%s118 + $0x18] sm:$0xff]
        %148 = vrot.lane.b32.xlu0 %v140, 1
        %v149 = vpop.permute.xlu0 %148
        %150 = vrot.lane.b32.xlu0 %v141, 1
        %v151 = vpop.permute.xlu0 %150
        %152 = vrot.lane.b32.xlu0 %v142, 1
        %v153 = vpop.permute.xlu0 %152
        %154 = vrot.lane.b32.xlu0 %v143, 1
        %v155 = vpop.permute.xlu0 %154
        %vm160 = vcmask 7168
        %v161 = vsel %vm160, 0.0, %v149
        %v162 = vsel %vm160, 0.0, %v151
        %v163 = vsel %vm160, 0.0, %v153
        %v164 = vsel %vm160, 0.0, %v155
        %vm165 = vcmask 138240
        %v166 = vsel %vm165, %v161, 0.0
        %v167 = vsel %vm165, %v162, 0.0
        %v168 = vsel %vm165, %v163, 0.0
        %v169 = vsel %vm165, %v164, 0.0
        %174 = vrot.lane.b32.xlu0 %v166, 127
        %v175 = vpop.permute.xlu0 %174
        %176 = vrot.lane.b32.xlu0 %v167, 127
        %v177 = vpop.permute.xlu0 %176
        %178 = vrot.lane.b32.xlu0 %v168, 127
        %v179 = vpop.permute.xlu0 %178
        %180 = vrot.lane.b32.xlu0 %v169, 127
        %v181 = vpop.permute.xlu0 %180
        %v186 = vadd.f32 %v166, %v175
        %v187 = vadd.f32 %v167, %v177
        %v188 = vadd.f32 %v168, %v179
        %v189 = vadd.f32 %v169, %v181
        %190 = vrot.lane.b32.xlu0 %v166, 126
        %v191 = vpop.permute.xlu0 %190
        %192 = vrot.lane.b32.xlu0 %v167, 126
        %v193 = vpop.permute.xlu0 %192
        %194 = vrot.lane.b32.xlu0 %v168, 126
        %v195 = vpop.permute.xlu0 %194
        %196 = vrot.lane.b32.xlu0 %v169, 126
        %v197 = vpop.permute.xlu0 %196
        %v202 = vadd.f32 %v186, %v191
        %v203 = vadd.f32 %v187, %v193
        %v204 = vadd.f32 %v188, %v195
        %v205 = vadd.f32 %v189, %v197
        %vm210 = vcmask 1040384
        %v211 = vrot.slane %v202, 7
        %v212 = vrot.slane %v203, 7
        %v213 = vsel %vm210, %v211, %v212
        %v214 = vrot.slane %v204, 7
        %v215 = vrot.slane %v205, 7
        %v216 = vsel %vm210, %v214, %v215
        %v223 = vsel %vm210, 0.0, %v211
        %v224 = vsel %vm210, 0.0, %v214
        %v225 = vsel %vm210, %v212, 0.0
        %v226 = vsel %vm210, %v215, 0.0
        %vm231 = vcmask 1046528
        %v232 = vrot.slane %v223, 1
        %v233 = vrot.slane %v213, 1
        %v234 = vsel %vm231, %v232, %v233
        %v235 = vrot.slane %v225, 1
        %v236 = vsel %vm231, %v233, %v235
        %v237 = vrot.slane %v224, 1
        %v238 = vrot.slane %v216, 1
        %v239 = vsel %vm231, %v237, %v238
        %v240 = vrot.slane %v226, 1
        %v241 = vsel %vm231, %v238, %v240
        %v246 = vadd.f32 %v223, %v234
        %v247 = vadd.f32 %v213, %v236
        %v248 = vadd.f32 %v224, %v239
        %v249 = vadd.f32 %v216, %v241
        %vm250 = vcmask 1045504
        %v251 = vrot.slane %v223, 2
        %v252 = vrot.slane %v213, 2
        %v253 = vsel %vm250, %v251, %v252
        %v254 = vrot.slane %v225, 2
        %v255 = vsel %vm250, %v252, %v254
        %v256 = vrot.slane %v224, 2
        %v257 = vrot.slane %v216, 2
        %v258 = vsel %vm250, %v256, %v257
        %v259 = vrot.slane %v226, 2
        %v260 = vsel %vm250, %v257, %v259
        %v265 = vadd.f32 %v246, %v253
        %v266 = vadd.f32 %v247, %v255
        %v267 = vadd.f32 %v248, %v258
        %v268 = vadd.f32 %v249, %v260
        %v269 = vmul.f32 %v265, 0.11111111
        %v270 = vmul.f32 %v266, 0.11111111
        %v271 = vmul.f32 %v267, 0.11111111
        %v272 = vmul.f32 %v268, 0.11111111
        %vm273 = vcmask 130048
        %274 = vst.msk [vmem:[%s137] sm:$0xff] %vm273, %v269
        %275 = vst.msk [vmem:[%s137 + $0x8] sm:$0xff] %vm273, %v270
        %276 = vst.msk [vmem:[%s137 + $0x10] sm:$0xff] %vm273, %v271
        %277 = vst.msk [vmem:[%s137 + $0x18] sm:$0xff] %vm273, %v272
        %s278 = sand.u32 %s52, 1
        %s279 = scalar_lea.sflag [#allocation4], %s278
        %s280 = sand.u32 %s52, 1
        %s281 = smul.addr %s280, 32
        %s282 = scalar_lea.vmem [#allocation5], %s281
        // Predicated region
        $region29: #{tpu_custom_call.1} parent=23 // pred_check
          %p283 = pneg %p62
        $region30: #{tpu_custom_call.1} parent=23 // pred_check_branch
          %285 = sbr.rel (%p283) target = $region32
        $region31: #{tpu_custom_call.1} parent=23 // pred_region
          %s286 = smul.u32 2, %s18
          %288 = vsyncadd %s279, 0
          %s289 = smul.addr %s286, 2
          %s290 = smul.addr %s289, 8
          %s291 = scalar_lea.hbm %s1, %s290
          %s292 = sshll.u32 %s282, 4
          %s293 = int_to_ptr.vmem [resolvable:$true] %s292
          %s294 = sshll.u32 %s291, 4
          %s295 = int_to_ptr.hbm [resolvable:$true] %s294
          %300 = dma.vmem_to_hbm [thread:$0]  %s293, 512, %s295, %s279, 128, 128, 8
        $region32: #{tpu_custom_call.1} parent=23 // pred_fallthru
          _
      $region24: #{tpu_custom_call.1} parent=5 // pred_fallthru
        _
      %p301 = scmp.le.s32.totalorder 2, %s13
      // Predicated region
      $region33: #{tpu_custom_call.1} parent=5 // pred_check
        %p302 = pneg %p301
      $region34: #{tpu_custom_call.1} parent=5 // pred_check_branch
        %304 = sbr.rel (%p302) target = $region36
      $region35: #{tpu_custom_call.1} parent=5 // pred_region
        %s305 = ssub.s32 %s13, 2
        // Predicated region
        $region37: #{tpu_custom_call.1} parent=35 // pred_check
          %p306 = pneg %p68
        $region38: #{tpu_custom_call.1} parent=35 // pred_check_branch
          %308 = sbr.rel (%p306) target = $region40
        $region39: #{tpu_custom_call.1} parent=35 // pred_region
          %s309 = sand.u32 %s53, 1
          %s310 = scalar_lea.sflag [#allocation4], %s309
          %s311 = sand.u32 %s53, 1
          %s312 = smul.addr %s311, 32
          %s313 = scalar_lea.vmem [#allocation5], %s312
          %315 = dma.done %s310, 512
        $region40: #{tpu_custom_call.1} parent=35 // pred_fallthru
          _
      $region36: #{tpu_custom_call.1} parent=5 // pred_fallthru
        _
    $region6: #{tpu_custom_call.1} parent=1 // loop_footer
      %s17 = sadd.s32 1, %s13
    $region7: #{tpu_custom_call.1} parent=1 // loop_footer_branch
      %12 = sbr.rel target = $region3
    $region8: #{tpu_custom_call.1} parent=1 // loop_exit
      _
    %316 = vsyncpa [#allocation3], 1
    %s317 = scalar_lea.sflag [#allocation3], 1
    %318 = vsyncpa %s317, 1
    %319 = vsyncpa [#allocation4], 1
    %s320 = scalar_lea.sflag [#allocation4], 1
    %321 = vsyncpa %s320, 1

</llo_original>
